<compile_context>
chip_gen: v7x
topology: tpu7x:2x2x1
jax: 0.10.0
libtpu: 0.0.40
codegen_flags: <defaults>
</compile_context>

<pallas_src>
import functools

import jax
import jax.numpy as jnp
from jax.experimental import pallas as pl
from jax.experimental.pallas import tpu as pltpu

L2FACTOR = (3.1416 / 2) ** 0.5   # module uses 3.1416, not math.pi
EPS = 1e-5
MOMENTUM = 0.9


# ----------------------------------------------------------------------------
# Single-pass kernel: one channel tile is fully VMEM-resident.
# ----------------------------------------------------------------------------
def _l1bn_kernel(x_ref, gamma_ref, beta_ref, y_ref, stats_ref):
    """x_ref/y_ref: (N, C_TILE, S) native dtype; gamma/beta: (C_TILE, 1) f32;
    stats_ref: (C_TILE, 2) f32 -> [:, 0] = mean, [:, 1] = l1scaled."""
    xf = x_ref[...].astype(jnp.float32)                     # single f32 copy in VMEM
    n, c, s_len = xf.shape
    inv_m = 1.0 / float(n * s_len)

    # Per-channel mean: lane reduce (axis 2) then batch reduce (axis 0).
    s = jnp.sum(xf, axis=2, keepdims=True)                  # (N, C_TILE, 1)
    mean = jnp.sum(s, axis=0, keepdims=True) * inv_m        # (1, C_TILE, 1)

    # L1 stat: do NOT bind (x - mean) to a name — keep it fused into the
    # reduction so no full-block f32 temp stays live until the final write.
    a = jnp.sum(jnp.abs(xf - mean), axis=2, keepdims=True)  # (N, C_TILE, 1)
    l1scaled = jnp.sum(a, axis=0, keepdims=True) * inv_m * L2FACTOR + EPS

    gamma = gamma_ref[...].reshape(1, c, 1)
    beta = beta_ref[...].reshape(1, c, 1)
    # One reciprocal per channel instead of a divide per element.
    scale = gamma * pl.reciprocal(l1scaled, approx=False)

    # Recompute (x - mean) here instead of reusing a long-lived temporary.
    y_ref[...] = ((xf - mean) * scale + beta).astype(y_ref.dtype)

    stats_ref[:, 0:1] = mean.reshape(c, 1)
    stats_ref[:, 1:2] = l1scaled.reshape(c, 1)


# ----------------------------------------------------------------------------
# Multi-pass fallback: grid (C_tiles, 3 phases, S_tiles); per-channel sums kept
# in persistent VMEM scratch across the (arbitrary) phase / spatial axes.
# ----------------------------------------------------------------------------
def _l1bn_multipass_kernel(s_total, inv_m,
                           x_ref, gamma_ref, beta_ref,
                           y_ref, stats_ref,
                           sum_sc, l1_sc):
    phase = pl.program_id(1)
    s_i = pl.program_id(2)
    last_s = pl.num_programs(2) - 1

    xf = x_ref[...].astype(jnp.float32)                     # (N, C_TILE, S_TILE)
    n, c, st = xf.shape

    # Lane mask for the (possibly partial) last spatial tile.
    col = jax.lax.broadcasted_iota(jnp.int32, (1, 1, st), 2) + s_i * st
    lane_ok = col < s_total

    @pl.when((phase == 0) & (s_i == 0))
    def _():
        sum_sc[...] = jnp.zeros_like(sum_sc)

    @pl.when(phase == 0)
    def _():
        part = jnp.sum(jnp.sum(jnp.where(lane_ok, xf, 0.0),
                               axis=2, keepdims=True), axis=0, keepdims=True)
        sum_sc[...] += part.reshape(c, 1)

    @pl.when((phase == 1) & (s_i == 0))
    def _():
        l1_sc[...] = jnp.zeros_like(l1_sc)

    @pl.when(phase == 1)
    def _():
        mean = (sum_sc[...] * inv_m).reshape(1, c, 1)
        part = jnp.sum(jnp.sum(jnp.where(lane_ok, jnp.abs(xf - mean), 0.0),
                               axis=2, keepdims=True), axis=0, keepdims=True)
        l1_sc[...] += part.reshape(c, 1)

    @pl.when((phase == 1) & (s_i == last_s))
    def _():
        stats_ref[:, 0:1] = sum_sc[...] * inv_m
        stats_ref[:, 1:2] = l1_sc[...] * inv_m * L2FACTOR + EPS

    @pl.when(phase == 2)
    def _():
        mean = (sum_sc[...] * inv_m).reshape(1, c, 1)
        l1scaled = (l1_sc[...] * inv_m * L2FACTOR + EPS).reshape(1, c, 1)
        scale = gamma_ref[...].reshape(1, c, 1) * pl.reciprocal(l1scaled, approx=False)
        beta = beta_ref[...].reshape(1, c, 1)
        # Out-of-range lanes of the partial last tile are masked on the store.
        y_ref[...] = ((xf - mean) * scale + beta).astype(y_ref.dtype)


# ----------------------------------------------------------------------------
# Tile picking / VMEM accounting
# ----------------------------------------------------------------------------
def _round_up(x, m):
    return ((x + m - 1) // m) * m


def _sublane(itemsize):
    return 8 if itemsize >= 4 else (16 if itemsize == 2 else 32)


def _vmem_budget():
    """(vmem_limit_bytes to request, per-grid-step footprint budget)."""
    cap = 64 << 20                       # v7x per-TC physical VMEM (smallest gen)
    try:
        cap = int(pltpu.get_tpu_info().vmem_capacity_bytes)
    except Exception:
        pass                             # conservative fallback keeps v7x safe
    limit = min((cap * 3) // 4, 96 << 20)
    budget = (limit * 4) // 5            # leave headroom for compiler scratch
    return limit, budget


def _block_bytes(N, ct, s_pad, itemsize, sub):
    # Double-buffered x + double-buffered y + ~8 B/elem of in-kernel f32 temps
    # (the f32 cast of x plus streaming temporaries), on padded tile shapes.
    return N * _round_up(ct, sub) * s_pad * (4 * itemsize + 8)


def _pick_c_tile(C, N, S, itemsize, budget):
    """Channel tile for the single-pass kernel, or None if nothing fits."""
    sub = _sublane(itemsize)
    s_pad = _round_up(S, 128)

    def fits(ct):
        return _block_bytes(N, ct, s_pad, itemsize, sub) <= budget

    if C < 2 * sub:                      # cannot meaningfully split channels
        return C if fits(C) else None

    # Force >= 2 (ideally >= 4) grid steps so pipelining and v7x two-core
    # sharding of the "parallel" channel axis actually engage.
    min_steps = 4 if C >= 4 * sub else 2
    ct = max(sub, (C // (min_steps * sub)) * sub)
    while ct >= sub:
        if fits(ct):
            return ct
        ct -= sub
    return None


def _pick_multipass_tiles(C, N, S, itemsize, budget):
    sub = _sublane(itemsize)
    c_tile = C if C <= sub else sub
    c_pad = _round_up(c_tile, sub)
    s_pad = _round_up(S, 128)
    per_lane = N * c_pad * (4 * itemsize + 8)
    max_lanes = max(128, budget // max(per_lane, 1))
    s_tile = min(s_pad, max(128, (max_lanes // 128) * 128))
    if s_tile >= S:
        s_tile = S                       # full spatial extent (always legal)
    # TODO(synk): if N alone is so large that an (N, sub, 128) block overflows
    # VMEM, an additional batch-tiling grid axis is needed; not implemented.
    return c_tile, s_tile


# ----------------------------------------------------------------------------
# Wrapper (training-mode forward + functional running-buffer update)
# ----------------------------------------------------------------------------
def l1_batch_norm_train(x, gamma, beta, running_mean, running_var,
                        momentum=MOMENTUM, *, max_block_bytes=None,
                        force_multipass=False):
    """Training-mode forward. Returns (y, new_running_mean, new_running_var)."""
    N, C = x.shape[0], x.shape[1]
    S = 1
    for d in x.shape[2:]:
        S *= d
    S = max(S, 1)

    # Free reshapes only — no transposes, native dtype preserved across the call.
    x3d = x.reshape(N, C, S)
    g = gamma.reshape(C, 1).astype(jnp.float32)
    b = beta.reshape(C, 1).astype(jnp.float32)
    itemsize = jnp.dtype(x.dtype).itemsize

    vmem_limit, budget = _vmem_budget()
    if max_block_bytes is not None:
        budget = max_block_bytes

    c_tile = None if force_multipass else _pick_c_tile(C, N, S, itemsize, budget)

    out_shape = [jax.ShapeDtypeStruct((N, C, S), x.dtype),
                 jax.ShapeDtypeStruct((C, 2), jnp.float32)]

    if c_tile is not None:
        # Single pass: each channel tile fully VMEM-resident. pl.cdiv grid so
        # trailing channels can never be silently dropped.
        grid = (pl.cdiv(C, c_tile),)
        y3d, stats = pl.pallas_call(
            _l1bn_kernel,
            grid=grid,
            in_specs=[
                pl.BlockSpec((N, c_tile, S), lambda i: (0, i, 0)),
                pl.BlockSpec((c_tile, 1), lambda i: (i, 0)),
                pl.BlockSpec((c_tile, 1), lambda i: (i, 0)),
            ],
            out_specs=[
                pl.BlockSpec((N, c_tile, S), lambda i: (0, i, 0)),
                pl.BlockSpec((c_tile, 2), lambda i: (i, 0)),
            ],
            out_shape=out_shape,
            compiler_params=pltpu.CompilerParams(
                dimension_semantics=("parallel",),
                vmem_limit_bytes=vmem_limit,
            ),
            cost_estimate=pl.CostEstimate(
                flops=6 * N * C * S, transcendentals=0,
                bytes_accessed=2 * N * C * S * itemsize),
        )(x3d, g, b)
    else:
        # Multi-pass fallback: 3 reads + 1 write of x, stats in VMEM scratch.
        c_tile, s_tile = _pick_multipass_tiles(C, N, S, itemsize, budget)
        grid = (pl.cdiv(C, c_tile), 3, pl.cdiv(S, s_tile))
        kernel = functools.partial(_l1bn_multipass_kernel, S, 1.0 / float(N * S))
        y3d, stats = pl.pallas_call(
            kernel,
            grid=grid,
            in_specs=[
                pl.BlockSpec((N, c_tile, s_tile), lambda c, p, s: (0, c, s)),
                pl.BlockSpec((c_tile, 1), lambda c, p, s: (c, 0)),
                pl.BlockSpec((c_tile, 1), lambda c, p, s: (c, 0)),
            ],
            out_specs=[
                # y only advances over spatial blocks during phase 2, so garbage
                # from phases 0/1 is never flushed to HBM.
                pl.BlockSpec((N, c_tile, s_tile),
                             lambda c, p, s: (0, c, jnp.where(p == 2, s, 0))),
                pl.BlockSpec((c_tile, 2), lambda c, p, s: (c, 0)),
            ],
            out_shape=out_shape,
            scratch_shapes=[
                pltpu.VMEM((c_tile, 1), jnp.float32),   # running sum(x)
                pltpu.VMEM((c_tile, 1), jnp.float32),   # running sum|x - mean|
            ],
            compiler_params=pltpu.CompilerParams(
                dimension_semantics=("parallel", "arbitrary", "arbitrary"),
                vmem_limit_bytes=vmem_limit,
            ),
            cost_estimate=pl.CostEstimate(
                flops=8 * N * C * S, transcendentals=0,
                bytes_accessed=4 * N * C * S * itemsize),
        )(x3d, g, b)

    y = y3d.reshape(x.shape)

    # Buffer update (torch.no_grad() part) as plain-JAX glue, matching the
    # module: running = running*mom + batch_stat*(1-mom); running_var stores
    # l1scaled (which already includes the l2factor and eps), as in PyTorch.
    mean_c = stats[:, 0]
    l1_c = stats[:, 1]
    new_running_mean = running_mean * momentum + mean_c * (1.0 - momentum)
    new_running_var = running_var * momentum + l1_c * (1.0 - momentum)
    return y, new_running_mean, new_running_var


# ----------------------------------------------------------------------------
# Reference + tests
# ----------------------------------------------------------------------------
def _reference(x, gamma, beta):
    xf = x.astype(jnp.float32)
    mean = xf.mean(axis=(0, 2, 3), keepdims=True)
    diff = xf - mean
    l1 = jnp.abs(diff).mean(axis=(0, 2, 3), keepdims=True)
    l1s = l1 * L2FACTOR + EPS
    return gamma.reshape(1, -1, 1, 1) * diff / l1s + beta.reshape(1, -1, 1, 1)


def _ref_stats(x):
    xf = x.astype(jnp.float32)
    mean_c = xf.mean(axis=(0, 2, 3))
    l1_c = jnp.abs(xf - mean_c.reshape(1, -1, 1, 1)).mean(axis=(0, 2, 3))
    return mean_c, l1_c * L2FACTOR + EPS


def _check(y, new_rm, new_rv, x, gamma, beta, rm, rv, name, atol=1e-5, rtol=1e-5):
    y_ref = _reference(x, gamma, beta)
    assert jnp.allclose(y.astype(jnp.float32), y_ref, atol=atol, rtol=rtol), \
        f"{name}: output mismatch vs reference"
    mean_ref_c, l1_ref_c = _ref_stats(x)
    rm_ref = rm * MOMENTUM + mean_ref_c * (1.0 - MOMENTUM)
    rv_ref = rv * MOMENTUM + l1_ref_c * (1.0 - MOMENTUM)
    assert jnp.allclose(new_rm, rm_ref, atol=1e-4, rtol=1e-4), f"{name}: running_mean mismatch"
    assert jnp.allclose(new_rv, rv_ref, atol=1e-4, rtol=1e-4), f"{name}: running_var mismatch"


if __name__ == "__main__":
    key = jax.random.PRNGKey(0)

    def make_inputs(key, N, C, H, W, dtype):
        kx, kg, kb = jax.random.split(key, 3)
        x = jax.random.normal(kx, (N, C, H, W), dtype=jnp.float32).astype(dtype)
        gamma = jnp.ones((1, C), jnp.float32) + 0.1 * jax.random.normal(kg, (1, C))
        beta = jnp.zeros((1, C), jnp.float32) + 0.1 * jax.random.normal(kb, (1, C))
        rm = jnp.zeros((C,), jnp.float32)
        rv = jnp.zeros((C,), jnp.float32)
        return x, gamma, beta, rm, rv

    # 1) Spec shape: N=2, C=4, 16x16, f32 — single-pass path, single channel block.
    k1, k2, k3, k4 = jax.random.split(key, 4)
    x, g, b, rm, rv = make_inputs(k1, 2, 4, 16, 16, jnp.float32)
    y, nrm, nrv = l1_batch_norm_train(x, g, b, rm, rv)
    jax.block_until_ready((y, nrm, nrv))
    _check(y, nrm, nrv, x, g, b, rm, rv, "single-pass C=4")

    # 2) C=32 f32 — single-pass path with a multi-step parallel channel grid.
    x, g, b, rm, rv = make_inputs(k2, 2, 32, 16, 16, jnp.float32)
    y, nrm, nrv = l1_batch_norm_train(x, g, b, rm, rv)
    jax.block_until_ready((y, nrm, nrv))
    _check(y, nrm, nrv, x, g, b, rm, rv, "single-pass C=32")

    # 3) bf16 input — exercises the 16-sublane granule and dtype round-trip.
    x, g, b, rm, rv = make_inputs(k3, 2, 32, 16, 16, jnp.bfloat16)
    y, nrm, nrv = l1_batch_norm_train(x, g, b, rm, rv)
    jax.block_until_ready((y, nrm, nrv))
    _check(y, nrm, nrv, x, g, b, rm, rv, "single-pass bf16", atol=3e-2, rtol=3e-2)

    # 4) Forced multi-pass path with a non-128-multiple spatial extent (12x12=144)
    #    and a tiny budget so the spatial axis is actually tiled (128 + partial 16).
    x, g, b, rm, rv = make_inputs(k4, 2, 4, 12, 12, jnp.float32)
    y, nrm, nrv = l1_batch_norm_train(x, g, b, rm, rv,
                                      force_multipass=True, max_block_bytes=60_000)
    jax.block_until_ready((y, nrm, nrv))
    _check(y, nrm, nrv, x, g, b, rm, rv, "multi-pass 12x12")

    print("KERNEL_OK")
</pallas_src>

<mosaic_0001>
module attributes {stable_mosaic.version = 11 : i64} {
  func.func @_l1bn_kernel(%arg0: i32, %arg1: memref<2x4x256xf32, #tpu.memory_space<vmem>>, %arg2: memref<4x1xf32, #tpu.memory_space<vmem>>, %arg3: memref<4x1xf32, #tpu.memory_space<vmem>>, %arg4: memref<2x4x256xf32, #tpu.memory_space<vmem>>, %arg5: memref<4x2xf32, #tpu.memory_space<vmem>>) attributes {dimension_semantics = [#tpu.dimension_semantics<parallel>], iteration_bounds = array<i64: 1>, scalar_prefetch = 0 : i64, scratch_operands = 0 : i64, tpu.core_type = #tpu.core_type<tc>, window_params = [{transform_indices = @transform_0, window_bounds = array<i64: 2, 4, 256>}, {transform_indices = @transform_1, window_bounds = array<i64: 4, 1>}, {transform_indices = @transform_2, window_bounds = array<i64: 4, 1>}, {transform_indices = @transform_3, window_bounds = array<i64: 2, 4, 256>}, {transform_indices = @transform_4, window_bounds = array<i64: 4, 2>}]} {
    %c0 = arith.constant 0 : index
    %c0_0 = arith.constant 0 : index
    %c0_1 = arith.constant 0 : index
    %0 = vector.load %arg1[%c0, %c0_0, %c0_1] : memref<2x4x256xf32, #tpu.memory_space<vmem>>, vector<2x4x256xf32>
    %cst = arith.constant dense<0.000000e+00> : vector<2x4xf32>
    %1 = vector.multi_reduction <add>, %0, %cst [2] : vector<2x4x256xf32> to vector<2x4xf32>
    %2 = vector.shape_cast %1 : vector<2x4xf32> to vector<2x4x1xf32>
    %cst_2 = arith.constant dense<0.000000e+00> : vector<4x1xf32>
    %3 = vector.multi_reduction <add>, %2, %cst_2 [0] : vector<2x4x1xf32> to vector<4x1xf32>
    %4 = vector.shape_cast %3 : vector<4x1xf32> to vector<1x4x1xf32>
    %cst_3 = arith.constant 0.001953125 : f32
    %5 = vector.broadcast %cst_3 : f32 to vector<1x4x1xf32>
    %6 = arith.mulf %4, %5 : vector<1x4x1xf32>
    %7 = vector.broadcast %6 : vector<1x4x1xf32> to vector<2x4x256xf32>
    %8 = arith.subf %0, %7 : vector<2x4x256xf32>
    %9 = math.absf %8 : vector<2x4x256xf32>
    %cst_4 = arith.constant dense<0.000000e+00> : vector<2x4xf32>
    %10 = vector.multi_reduction <add>, %9, %cst_4 [2] : vector<2x4x256xf32> to vector<2x4xf32>
    %11 = vector.shape_cast %10 : vector<2x4xf32> to vector<2x4x1xf32>
    %cst_5 = arith.constant dense<0.000000e+00> : vector<4x1xf32>
    %12 = vector.multi_reduction <add>, %11, %cst_5 [0] : vector<2x4x1xf32> to vector<4x1xf32>
    %13 = vector.shape_cast %12 : vector<4x1xf32> to vector<1x4x1xf32>
    %cst_6 = arith.constant 0.001953125 : f32
    %14 = vector.broadcast %cst_6 : f32 to vector<1x4x1xf32>
    %15 = arith.mulf %13, %14 : vector<1x4x1xf32>
    %cst_7 = arith.constant 1.25331557 : f32
    %16 = vector.broadcast %cst_7 : f32 to vector<1x4x1xf32>
    %17 = arith.mulf %15, %16 : vector<1x4x1xf32>
    %cst_8 = arith.constant 9.99999974E-6 : f32
    %18 = vector.broadcast %cst_8 : f32 to vector<1x4x1xf32>
    %19 = arith.addf %17, %18 : vector<1x4x1xf32>
    %c0_9 = arith.constant 0 : index
    %c0_10 = arith.constant 0 : index
    %20 = vector.load %arg2[%c0_9, %c0_10] : memref<4x1xf32, #tpu.memory_space<vmem>>, vector<4x1xf32>
    %21 = vector.shape_cast %20 : vector<4x1xf32> to vector<1x4x1xf32>
    %c0_11 = arith.constant 0 : index
    %c0_12 = arith.constant 0 : index
    %22 = vector.load %arg3[%c0_11, %c0_12] : memref<4x1xf32, #tpu.memory_space<vmem>>, vector<4x1xf32>
    %23 = vector.shape_cast %22 : vector<4x1xf32> to vector<1x4x1xf32>
    %24 = tpu.reciprocal %19 : vector<1x4x1xf32> -> vector<1x4x1xf32>
    %25 = arith.mulf %21, %24 : vector<1x4x1xf32>
    %26 = vector.broadcast %6 : vector<1x4x1xf32> to vector<2x4x256xf32>
    %27 = arith.subf %0, %26 : vector<2x4x256xf32>
    %28 = vector.broadcast %25 : vector<1x4x1xf32> to vector<2x4x256xf32>
    %29 = arith.mulf %27, %28 : vector<2x4x256xf32>
    %30 = vector.broadcast %23 : vector<1x4x1xf32> to vector<2x4x256xf32>
    %31 = arith.addf %29, %30 : vector<2x4x256xf32>
    %c0_13 = arith.constant 0 : index
    %c0_14 = arith.constant 0 : index
    %c0_15 = arith.constant 0 : index
    %32 = vector.load %arg4[%c0_13, %c0_14, %c0_15] : memref<2x4x256xf32, #tpu.memory_space<vmem>>, vector<2x4x256xf32>
    tpu.vector_store %arg4[%c0_13, %c0_14, %c0_15], %31 {strides = array<i32>} : memref<2x4x256xf32, #tpu.memory_space<vmem>>, vector<2x4x256xf32>,
    %33 = vector.shape_cast %6 : vector<1x4x1xf32> to vector<4x1xf32>
    %c0_16 = arith.constant 0 : index
    %c0_17 = arith.constant 0 : index
    %34 = vector.load %arg5[%c0_16, %c0_17] : memref<4x2xf32, #tpu.memory_space<vmem>>, vector<4x1xf32>
    tpu.vector_store %arg5[%c0_16, %c0_17], %33 {strides = array<i32>} : memref<4x2xf32, #tpu.memory_space<vmem>>, vector<4x1xf32>,
    %35 = vector.shape_cast %19 : vector<1x4x1xf32> to vector<4x1xf32>
    %c0_18 = arith.constant 0 : index
    %c1 = arith.constant 1 : index
    %36 = vector.load %arg5[%c0_18, %c1] : memref<4x2xf32, #tpu.memory_space<vmem>>, vector<4x1xf32>
    tpu.vector_store %arg5[%c0_18, %c1], %35 {strides = array<i32>} : memref<4x2xf32, #tpu.memory_space<vmem>>, vector<4x1xf32>,
    return
  }
  func.func @transform_0(%arg0: i32) -> (i32, i32, i32) {
    %c0_i32 = arith.constant 0 : i32
    %c0_i32_0 = arith.constant 0 : i32
    %c0_i32_1 = arith.constant 0 : i32
    return %c0_i32, %arg0, %c0_i32_0 : i32, i32, i32
  }
  func.func @transform_1(%arg0: i32) -> (i32, i32) {
    %c0_i32 = arith.constant 0 : i32
    %c0_i32_0 = arith.constant 0 : i32
    return %arg0, %c0_i32 : i32, i32
  }
  func.func @transform_2(%arg0: i32) -> (i32, i32) {
    %c0_i32 = arith.constant 0 : i32
    %c0_i32_0 = arith.constant 0 : i32
    return %arg0, %c0_i32 : i32, i32
  }
  func.func @transform_3(%arg0: i32) -> (i32, i32, i32) {
    %c0_i32 = arith.constant 0 : i32
    %c0_i32_0 = arith.constant 0 : i32
    %c0_i32_1 = arith.constant 0 : i32
    return %c0_i32, %arg0, %c0_i32_0 : i32, i32, i32
  }
  func.func @transform_4(%arg0: i32) -> (i32, i32) {
    %c0_i32 = arith.constant 0 : i32
    %c0_i32_0 = arith.constant 0 : i32
    return %arg0, %c0_i32 : i32, i32
  }
}

</mosaic_0001>

<llo_original>
// kernel: tpu_custom_call.1
$region0: #{tpu_custom_call.1}
  #allocation0 [shape = 'u32[]', space=smem, size = 0x4, offset = 0x4, fixed_abs, tag = 'smem constant byte address 0x4 - core index']
  #allocation1 [shape = 'u32[144,128]{1,0:T(1,128)}', space=vmem, size = 0x12000, scoped, tag = 'internal scratch']
  %s0 = inlined_call_operand.hbm [shape: f32[2,4,256], index: 0, kind: input, shape index: {}]
  %s1 = inlined_call_operand.vmem [shape: f32[4,1], index: 1, kind: input, shape index: {}]
  %s2 = inlined_call_operand.vmem [shape: f32[4,1], index: 2, kind: input, shape index: {}]
  %s3 = inlined_call_operand.hbm [shape: f32[2,4,256], index: 3, kind: output, shape index: {0}]
  %s4 = inlined_call_operand.vmem [shape: f32[4,2], index: 4, kind: output, shape index: {1}]
  %5 = xla_tuple %s3, %s4
  %s6 = sld [smem:[#allocation0]]
  $region34: #{tpu_custom_call.1} parent=0
    _
  %s8 = ssub.s32 1, %s6
  %s9 = scalar_select 0, %s8, %s6
  $region1: #{tpu_custom_call.1} parent=0
    #allocation2 [shape = 'u8[8192]{0}', space=vmem, size = 0x2000, scoped, tag = 'input window, operand 0, single buffered']
    #allocation3 [shape = 's32[1]{0}', space=sflag, size = 0x4, scoped, tag = 'scoped memory for tpu_custom_call.1']
    #allocation4 [shape = 's32[1]{0}', space=sflag, size = 0x4, scoped, tag = 'scoped memory for tpu_custom_call.1']
    #allocation5 [shape = 'u8[8192]{0}', space=vmem, size = 0x2000, scoped, tag = 'output window, operand 0, single buffered']
    %10 = vsyncpa [#allocation3], 0
    %11 = vsyncpa [#allocation4], 0
    // Predicated region
    $region2: #{tpu_custom_call.1} parent=1 // pred_check
      _
    $region3: #{tpu_custom_call.1} parent=1 // pred_check_branch
      %13 = sbr.rel (0) target = $region5
    $region4: #{tpu_custom_call.1} parent=1 // pred_region
      %s15 = ssub.s32 256, 256
      %16 = vsyncadd [#allocation3], %s15
      %s17 = sshll.u32 [#allocation2], 4
      %s18 = int_to_ptr.vmem [resolvable:$true] %s17
      %23 = dma.hbm_to_vmem [thread:$0]  %s0, 256, %s18, [#allocation3], 128, 128, 8
    $region5: #{tpu_custom_call.1} parent=1 // pred_fallthru
      _
    // Predicated region
    $region6: #{tpu_custom_call.1} parent=1 // pred_check
      _
    $region7: #{tpu_custom_call.1} parent=1 // pred_check_branch
      %25 = sbr.rel (0) target = $region9
    $region8: #{tpu_custom_call.1} parent=1 // pred_region
      _
    $region9: #{tpu_custom_call.1} parent=1 // pred_fallthru
      _
    // Predicated region
    $region10: #{tpu_custom_call.1} parent=1 // pred_check
      _
    $region11: #{tpu_custom_call.1} parent=1 // pred_check_branch
      %27 = sbr.rel (0) target = $region13
    $region12: #{tpu_custom_call.1} parent=1 // pred_region
      _
    $region13: #{tpu_custom_call.1} parent=1 // pred_fallthru
      _
    // Predicated region
    $region14: #{tpu_custom_call.1} parent=1 // pred_check
      _
    $region15: #{tpu_custom_call.1} parent=1 // pred_check_branch
      %29 = sbr.rel (0) target = $region17
    $region16: #{tpu_custom_call.1} parent=1 // pred_region
      %30 = dma.done [#allocation3], 256
    $region17: #{tpu_custom_call.1} parent=1 // pred_fallthru
      _
    %v31 = vld [vmem:[#allocation2] sm:$0xff]
    %v32 = vld [vmem:[#allocation2 + $0x8] sm:$0xff]
    %v35 = vcombine.high %v31, %v31
    %v36 = vcombine.high %v32, %v32
    %vm39 = vcmask 1043456
    %v40 = vsel %vm39, %v31, 0.0
    %v41 = vsel %vm39, %v35, 0.0
    %v42 = vadd.f32 %v40, %v41
    %43 = vadd.xlane.f32.xlu0 %v42
    %v44 = vpop.xlane.xlu0 %43
    %v45 = vsel %vm39, %v32, 0.0
    %v46 = vsel %vm39, %v36, 0.0
    %v47 = vadd.f32 %v45, %v46
    %48 = vadd.xlane.f32.xlu0 %v47
    %v49 = vpop.xlane.xlu0 %48
    %v50 = vsel %vm39, %v44, 0.0
    %v51 = vsel %vm39, %v49, 0.0
    %v52 = vadd.f32 %v50, %v51
    %v53 = vmul.f32 %v52, 0.001953125
    %v56 = vunpack.c.l.s4 839922192
    %v57 = vunpack.c.0.s8 %v56
    %v58 = vlaneseq
    %v59 = vshrl.u32 %v58, 7
    %v60 = vsub.s32 %v57, %v59
    %v61 = vrot.slane %v53, %v60
    %v63 = vsub.f32 %v31, %v61
    %v64 = vsub.f32 %v32, %v61
    %v65 = vand.u32 2147483647, %v63
    %v66 = vand.u32 2147483647, %v64
    %v69 = vcombine.high %v65, %v65
    %v70 = vcombine.high %v66, %v66
    %v73 = vsel %vm39, %v65, 0.0
    %v74 = vsel %vm39, %v69, 0.0
    %v75 = vadd.f32 %v73, %v74
    %76 = vadd.xlane.f32.xlu0 %v75
    %v77 = vpop.xlane.xlu0 %76
    %v78 = vsel %vm39, %v66, 0.0
    %v79 = vsel %vm39, %v70, 0.0
    %v80 = vadd.f32 %v78, %v79
    %81 = vadd.xlane.f32.xlu0 %v80
    %v82 = vpop.xlane.xlu0 %81
    %v83 = vsel %vm39, %v77, 0.0
    %v84 = vsel %vm39, %v82, 0.0
    %v85 = vadd.f32 %v83, %v84
    %v86 = vmul.f32 %v85, 0.001953125
    %v87 = vmul.f32 %v86, 1.2533156
    %v88 = vadd.f32 %v87, 1e-05
    %v89 = vld [vmem:[%s1] sm:$0xf]
    %v90 = vld [vmem:[%s2] sm:$0xf]
    %v91 = vrcp.pop %v88
    %v92 = vmul.f32 %v89, %v91
    %94 = vset.pattern.permute.xlu0 0
    %95 = vperm.xlu0 %94, %v92
    %v96 = vpop.permute.xlu0 %95
    %v98 = vunpack.c.l.s4 839922192
    %v99 = vunpack.c.0.s8 %v98
    %v100 = vlaneseq
    %v101 = vshrl.u32 %v100, 7
    %v102 = vsub.s32 %v99, %v101
    %v103 = vrot.slane %v96, %v102
    %v105 = vmul.f32 %v63, %v103
    %v106 = vmul.f32 %v64, %v103
    %108 = vset.pattern.permute.xlu0 0
    %109 = vperm.xlu0 %108, %v90
    %v110 = vpop.permute.xlu0 %109
    %v112 = vunpack.c.l.s4 839922192
    %v113 = vunpack.c.0.s8 %v112
    %v114 = vlaneseq
    %v115 = vshrl.u32 %v114, 7
    %v116 = vsub.s32 %v113, %v115
    %v117 = vrot.slane %v110, %v116
    %v119 = vadd.f32 %v105, %v117
    %v120 = vadd.f32 %v106, %v117
    %121 = vst [vmem:[#allocation5] sm:$0xff] %v119
    %122 = vst [vmem:[#allocation5 + $0x8] sm:$0xff] %v120
    %vm123 = vcmask 3072
    %124 = vst.msk [vmem:[%s4] sm:$0xf] %vm123, %v53
    %vm125 = vcmask 11272
    %126 = vst.msk [vmem:[%s4] sm:$0xf] %vm125, %v88
    // Predicated region
    $region18: #{tpu_custom_call.1} parent=1 // pred_check
      _
    $region19: #{tpu_custom_call.1} parent=1 // pred_check_branch
      %128 = sbr.rel (0) target = $region21
    $region20: #{tpu_custom_call.1} parent=1 // pred_region
      %s130 = ssub.s32 256, 256
      %131 = vsyncadd [#allocation4], %s130
      %s132 = sshll.u32 [#allocation5], 4
      %s133 = int_to_ptr.vmem [resolvable:$true] %s132
      %138 = dma.vmem_to_hbm [thread:$0]  %s133, 256, %s3, [#allocation4], 128, 128, 8
    $region21: #{tpu_custom_call.1} parent=1 // pred_fallthru
      _
    // Predicated region
    $region22: #{tpu_custom_call.1} parent=1 // pred_check
      _
    $region23: #{tpu_custom_call.1} parent=1 // pred_check_branch
      %140 = sbr.rel (0) target = $region25
    $region24: #{tpu_custom_call.1} parent=1 // pred_region
      _
    $region25: #{tpu_custom_call.1} parent=1 // pred_fallthru
      _
    // Predicated region
    $region26: #{tpu_custom_call.1} parent=1 // pred_check
      _
    $region27: #{tpu_custom_call.1} parent=1 // pred_check_branch
      %142 = sbr.rel (0) target = $region29
    $region28: #{tpu_custom_call.1} parent=1 // pred_region
      %143 = dma.done [#allocation4], 256
    $region29: #{tpu_custom_call.1} parent=1 // pred_fallthru
      _
    // Predicated region
    $region30: #{tpu_custom_call.1} parent=1 // pred_check
      _
    $region31: #{tpu_custom_call.1} parent=1 // pred_check_branch
      %145 = sbr.rel (0) target = $region33
    $region32: #{tpu_custom_call.1} parent=1 // pred_region
      _
    $region33: #{tpu_custom_call.1} parent=1 // pred_fallthru
      _
    %146 = vsyncpa [#allocation3], 1
    %147 = vsyncpa [#allocation4], 1

</llo_original>
